<compile_context>
chip_gen: v5e
topology: v5e:2x2
jax: 0.10.0
libtpu: 0.0.40
codegen_flags: <defaults>
</compile_context>

<pallas_src>
import jax
import jax.numpy as jnp
from jax.experimental import pallas as pl
from jax.experimental.pallas import tpu as pltpu

# Small compat shim (newer JAX: CompilerParams, older: TPUCompilerParams).
_CompilerParams = getattr(pltpu, "CompilerParams", None) or getattr(
    pltpu, "TPUCompilerParams", None
)

_TARGET_BLOCK_BYTES = 2 * 1024 * 1024  # ~2 MiB per (1, B, TL) block


def _seq_tile(batch, seq_len, itemsize, target_bytes=_TARGET_BLOCK_BYTES):
    """Largest multiple-of-128 divisor of seq_len whose (batch, tile) block fits."""
    if seq_len % 128 != 0:
        return seq_len  # ragged sequence: use the full (lane) extent
    best = 128
    for t in range(128, seq_len + 1, 128):
        if seq_len % t == 0 and batch * t * itemsize <= target_bytes:
            best = t
    return best


def _keep_mask(key, p, n_chs):
    """Channel survives nn.Dropout(p) applied to a ones vector with prob 1 - p."""
    return jax.random.bernoulli(key, 1.0 - p, (n_chs,))


# ----------------------------------------------------------------------------
# TPU path: in-kernel hardware PRNG, noise generation gated per channel block.
# ----------------------------------------------------------------------------
def _dropout_channels_rng_kernel(seed_ref, keep_ref, x_ref, o_ref):
    # seed_ref : SMEM int32[1]   (scalar prefetch)
    # keep_ref : SMEM int32[C]   (scalar prefetch) 1 = keep channel, 0 = drop
    # x_ref/o_ref : VMEM (1, B, TL)
    c = pl.program_id(0)  # channel index
    s = pl.program_id(1)  # sequence-tile index
    # Unique PRNG stream per (channel, seq-tile) block so tiles never repeat noise.
    pltpu.prng_seed(seed_ref[0], c, s)
    keep = keep_ref[c]

    @pl.when(keep != 0)
    def _():
        o_ref[...] = x_ref[...]  # kept channel: pure copy, no EUP work

    @pl.when(keep == 0)
    def _():
        noise = pltpu.stateful_normal(x_ref.shape, jnp.float32)
        o_ref[...] = noise.astype(o_ref.dtype)


def _forward_tpu(xc, keep_i32, seed, seq_tile):
    n_chs, batch, seq_len = xc.shape
    grid = (n_chs, seq_len // seq_tile)
    block = (1, batch, seq_tile)
    idx = lambda c, s, seed_ref, keep_ref: (c, 0, s)

    extra = {}
    if _CompilerParams is not None:
        extra["compiler_params"] = _CompilerParams(
            dimension_semantics=("parallel", "parallel")
        )
    return pl.pallas_call(
        _dropout_channels_rng_kernel,
        out_shape=jax.ShapeDtypeStruct(xc.shape, xc.dtype),
        grid_spec=pltpu.PrefetchScalarGridSpec(
            num_scalar_prefetch=2,
            grid=grid,
            in_specs=[pl.BlockSpec(block, idx)],
            out_specs=pl.BlockSpec(block, idx),
        ),
        **extra,
    )(seed, keep_i32, xc)


# ----------------------------------------------------------------------------
# Portable fallback (non-TPU backends / interpret): noise precomputed by XLA,
# kernel is a per-channel select. Same grid / tiling as the TPU path.
# ----------------------------------------------------------------------------
def _dropout_channels_select_kernel(keep_ref, x_ref, n_ref, o_ref):
    keep = keep_ref[0, 0, 0] != 0
    o_ref[...] = jnp.where(keep, x_ref[...], n_ref[...])


def _forward_portable(xc, keep_i32, noise, seq_tile):
    n_chs, batch, seq_len = xc.shape
    grid = (n_chs, seq_len // seq_tile)
    block = (1, batch, seq_tile)
    data_idx = lambda c, s: (c, 0, s)
    return pl.pallas_call(
        _dropout_channels_select_kernel,
        out_shape=jax.ShapeDtypeStruct(xc.shape, xc.dtype),
        grid=grid,
        in_specs=[
            pl.BlockSpec((1, 1, 1), lambda c, s: (c, 0, 0)),
            pl.BlockSpec(block, data_idx),
            pl.BlockSpec(block, data_idx),
        ],
        out_specs=pl.BlockSpec(block, data_idx),
    )(keep_i32.reshape(n_chs, 1, 1), xc, noise)


def dropout_channels_forward(x, *, p=0.5, key, training=True):
    """x: [batch, n_chs, seq_len]. Dropped channels are replaced by N(0,1) noise."""
    if not training:
        return x
    batch, n_chs, seq_len = x.shape
    k_mask, k_noise = jax.random.split(key)
    keep_i32 = _keep_mask(k_mask, p, n_chs).astype(jnp.int32)

    xc = jnp.transpose(x, (1, 0, 2))  # channel-major [C, B, L]
    seq_tile = _seq_tile(batch, seq_len, x.dtype.itemsize)

    if jax.default_backend() == "tpu" and hasattr(pltpu, "stateful_normal"):
        seed = jax.random.randint(k_noise, (1,), 0, 2**30, dtype=jnp.int32)
        out_c = _forward_tpu(xc, keep_i32, seed, seq_tile)
    else:
        # TODO(synk): in-kernel TPU PRNG (pltpu.prng_seed / stateful_normal) has
        # no CPU lowering; on non-TPU backends noise is generated by XLA outside
        # the kernel and the kernel reduces to a per-channel select.
        noise = jax.random.normal(k_noise, xc.shape, dtype=xc.dtype)
        out_c = _forward_portable(xc, keep_i32, noise, seq_tile)
    return jnp.transpose(out_c, (1, 0, 2))


if __name__ == "__main__":
    key = jax.random.PRNGKey(0)
    k_x, k_drop = jax.random.split(key)

    B, C, L = 2, 4, 16
    p = 0.5
    x = jax.random.normal(k_x, (B, C, L), dtype=jnp.float32)

    out = jax.block_until_ready(
        dropout_channels_forward(x, p=p, key=k_drop, training=True)
    )

    assert out.shape == x.shape and out.dtype == x.dtype

    # Re-derive the channel keep mask the wrapper used (same deterministic split).
    keep_ch = _keep_mask(jax.random.split(k_drop)[0], p, C)
    for c in range(C):
        if bool(keep_ch[c]):
            assert jnp.array_equal(out[:, c, :], x[:, c, :]), f"kept channel {c} changed"
        else:
            assert not bool(
                jnp.allclose(out[:, c, :], x[:, c, :])
            ), f"dropped channel {c} was not replaced"
            assert bool(jnp.all(jnp.isfinite(out[:, c, :])))

    # Eval mode is the identity.
    out_eval = dropout_channels_forward(x, p=p, key=k_drop, training=False)
    assert jnp.array_equal(out_eval, x)

    print("KERNEL_OK")
</pallas_src>

<mosaic_0001>
module attributes {stable_mosaic.version = 11 : i64} {
  func.func @_dropout_channels_select_kernel(%arg0: i32, %arg1: i32, %arg2: memref<1x1x1xi32, #tpu.memory_space<vmem>>, %arg3: memref<1x2x16xf32, #tpu.memory_space<vmem>>, %arg4: memref<1x2x16xf32, #tpu.memory_space<vmem>>, %arg5: memref<1x2x16xf32, #tpu.memory_space<vmem>>) attributes {dimension_semantics = [#tpu.dimension_semantics<arbitrary>, #tpu.dimension_semantics<arbitrary>], iteration_bounds = array<i64: 4, 1>, scalar_prefetch = 0 : i64, scratch_operands = 0 : i64, tpu.core_type = #tpu.core_type<tc>, window_params = [{transform_indices = @transform_0, window_bounds = array<i64: 1, 1, 1>}, {transform_indices = @transform_1, window_bounds = array<i64: 1, 2, 16>}, {transform_indices = @transform_2, window_bounds = array<i64: 1, 2, 16>}, {transform_indices = @transform_3, window_bounds = array<i64: 1, 2, 16>}]} {
    %c0 = arith.constant 0 : index
    %c0_0 = arith.constant 0 : index
    %c0_1 = arith.constant 0 : index
    %0 = vector.load %arg2[%c0, %c0_0, %c0_1] : memref<1x1x1xi32, #tpu.memory_space<vmem>>, vector<1x1x1xi32>
    %1 = vector.extract %0[0, 0, 0] : i32 from vector<1x1x1xi32>
    %c0_i32 = arith.constant 0 : i32
    %2 = arith.cmpi ne, %1, %c0_i32 : i32
    %c0_2 = arith.constant 0 : index
    %c0_3 = arith.constant 0 : index
    %c0_4 = arith.constant 0 : index
    %3 = vector.load %arg3[%c0_2, %c0_3, %c0_4] : memref<1x2x16xf32, #tpu.memory_space<vmem>>, vector<1x2x16xf32>
    %c0_5 = arith.constant 0 : index
    %c0_6 = arith.constant 0 : index
    %c0_7 = arith.constant 0 : index
    %4 = vector.load %arg4[%c0_5, %c0_6, %c0_7] : memref<1x2x16xf32, #tpu.memory_space<vmem>>, vector<1x2x16xf32>
    %5 = arith.select %2, %3, %4 : vector<1x2x16xf32>
    %c0_8 = arith.constant 0 : index
    %c0_9 = arith.constant 0 : index
    %c0_10 = arith.constant 0 : index
    %6 = vector.load %arg5[%c0_8, %c0_9, %c0_10] : memref<1x2x16xf32, #tpu.memory_space<vmem>>, vector<1x2x16xf32>
    tpu.vector_store %arg5[%c0_8, %c0_9, %c0_10], %5 {strides = array<i32>} : memref<1x2x16xf32, #tpu.memory_space<vmem>>, vector<1x2x16xf32>,
    return
  }
  func.func @transform_0(%arg0: i32, %arg1: i32) -> (i32, i32, i32) {
    %c0_i32 = arith.constant 0 : i32
    %c0_i32_0 = arith.constant 0 : i32
    %c0_i32_1 = arith.constant 0 : i32
    return %arg0, %c0_i32, %c0_i32_0 : i32, i32, i32
  }
  func.func @transform_1(%arg0: i32, %arg1: i32) -> (i32, i32, i32) {
    %c0_i32 = arith.constant 0 : i32
    %c0_i32_0 = arith.constant 0 : i32
    return %arg0, %c0_i32, %arg1 : i32, i32, i32
  }
  func.func @transform_2(%arg0: i32, %arg1: i32) -> (i32, i32, i32) {
    %c0_i32 = arith.constant 0 : i32
    %c0_i32_0 = arith.constant 0 : i32
    return %arg0, %c0_i32, %arg1 : i32, i32, i32
  }
  func.func @transform_3(%arg0: i32, %arg1: i32) -> (i32, i32, i32) {
    %c0_i32 = arith.constant 0 : i32
    %c0_i32_0 = arith.constant 0 : i32
    return %arg0, %c0_i32, %arg1 : i32, i32, i32
  }
}

</mosaic_0001>

<llo_original>
// kernel: tpu_custom_call.1
$region0: #{tpu_custom_call.1}
  #allocation0 [shape = 'u32[]', space=smem, size = 0x4, offset = 0x4, fixed_abs, tag = 'smem constant byte address 0x4 - core index']
  #allocation1 [shape = 'u32[72,128]{1,0:T(1,128)}', space=vmem, size = 0x9000, scoped, tag = 'internal scratch']
  %s0 = inlined_call_operand.vmem [shape: s32[4,1,1], index: 0, kind: input, shape index: {}]
  %s1 = inlined_call_operand.hbm [shape: f32[4,2,16], index: 1, kind: input, shape index: {}]
  %s2 = inlined_call_operand.hbm [shape: f32[4,2,16], index: 2, kind: input, shape index: {}]
  %s3 = inlined_call_operand.hbm [shape: f32[4,2,16], index: 3, kind: output, shape index: {}]
  %s4 = sld [smem:[#allocation0]]
  $region53: #{tpu_custom_call.1} parent=0
    _
  %s6 = ssub.s32 1, %s4
  %s7 = scalar_select 0, %s6, %s4
  $region1: #{tpu_custom_call.1} parent=0
    #allocation2 [shape = 'u8[2048]{0}', space=vmem, size = 0x800, scoped, tag = 'input window, operand 1']
    #allocation3 [shape = 's32[2]{0}', space=sflag, size = 0x8, scoped, tag = 'scoped memory for tpu_custom_call.1']
    #allocation4 [shape = 's32[2]{0}', space=sflag, size = 0x8, scoped, tag = 'scoped memory for tpu_custom_call.1']
    #allocation5 [shape = 'u8[2048]{0}', space=vmem, size = 0x800, scoped, tag = 'input window, operand 2']
    #allocation6 [shape = 's32[2]{0}', space=sflag, size = 0x8, scoped, tag = 'scoped memory for tpu_custom_call.1']
    #allocation7 [shape = 'u8[2048]{0}', space=vmem, size = 0x800, scoped, tag = 'output window, operand 0']
    %8 = vsyncpa [#allocation3], 0
    %s9 = scalar_lea.sflag [#allocation3], 1
    %10 = vsyncpa %s9, 0
    %11 = vsyncpa [#allocation6], 0
    %s12 = scalar_lea.sflag [#allocation6], 1
    %13 = vsyncpa %s12, 0
    %14 = vsyncpa [#allocation4], 0
    %s15 = scalar_lea.sflag [#allocation4], 1
    %16 = vsyncpa %s15, 0
    loop: start=0, step=1, limit=6
    $region2: #{tpu_custom_call.1} parent=1 // loop_pre_header
      _
    $region3: #{tpu_custom_call.1} parent=1 // loop_header
      %s18 = sphi 0, %s22
      %p19 = scmp.ge.s32.totalorder %s18, 6
      %s25 = sphi 0, %s37
      %s26 = sphi 0, %s33
      %s27 = sphi 0, %s25
      %s28 = sphi 0, %s26
      %s29 = sphi 0, %s27
      %s30 = sphi 0, %s28
      %s40 = sphi 0, %s42
      %s43 = sphi 0, %s40
      %s44 = sphi 0, %s43
      %s60 = sphi 0, %s44
      %s68 = sphi 0, %s70
      %s71 = sphi 0, %s68
      %s72 = sphi 0, %s71
      %s88 = sphi 0, %s72
      %s96 = sphi 0, %s98
      %s99 = sphi 0, %s96
      %s100 = sphi 0, %s99
      %s116 = sphi 0, %s100
      %s124 = sphi 0, %s126
      %s127 = sphi 0, %s124
      %s128 = sphi 0, %s127
      %s144 = sphi 0, %s128
    $region4: #{tpu_custom_call.1} parent=1 // loop_header_branch
      %21 = sbr.rel (%p19) target = $region8
    $region5: #{tpu_custom_call.1} parent=1 // loop_body
      %s23 = ssub.s32 %s18, 1
      %s24 = ssub.s32 %s18, 2
      %s31 = sadd.s32 1, %s26
      %p32 = scmp.ge.s32.totalorder %s31, 1
      %s33 = scalar_select %p32, 0, %s31
      %s34 = sadd.s32 1, %s25
      %s35 = scalar_select %p32, %s34, %s25
      %p36 = scmp.ge.s32.totalorder %s35, 4
      %s37 = scalar_select %p36, 0, %s35
      %s38 = ssub.s32 %s25, %s37
      %p39 = scmp.eq.s32.totalorder %s38, 0
      %s41 = sadd.s32 %s40, 1
      %s42 = scalar_select %p39, %s40, %s41
      %p45 = pneg %p39
      %p46 = scmp.eq.s32.totalorder %s18, 3
      %p47 = por %p45, %p46
      %p48 = scmp.ne.s32.totalorder %s40, %s43
      %p49 = scmp.eq.s32.totalorder %s18, 0
      %p50 = por %p48, %p49
      %p51 = scmp.ne.s32.totalorder %s40, %s43
      %p52 = scmp.eq.s32.totalorder %s23, 3
      %p53 = por %p51, %p52
      %p54 = scmp.ne.s32.totalorder %s43, %s44
      %p55 = scmp.eq.s32.totalorder %s23, 0
      %p56 = por %p54, %p55
      %p57 = scmp.ne.s32.totalorder %s43, %s44
      %p58 = scmp.eq.s32.totalorder %s24, 3
      %p59 = por %p57, %p58
      %p61 = scmp.ne.s32.totalorder %s44, %s60
      %p62 = scmp.eq.s32.totalorder %s24, 0
      %p63 = por %p61, %p62
      %s64 = ssub.s32 %s25, %s37
      %s65 = ssub.s32 %s26, %s33
      %s66 = sor.u32 %s64, %s65
      %p67 = scmp.eq.s32.totalorder %s66, 0
      %s69 = sadd.s32 %s68, 1
      %s70 = scalar_select %p67, %s68, %s69
      %p73 = pneg %p67
      %p74 = scmp.eq.s32.totalorder %s18, 3
      %p75 = por %p73, %p74
      %p76 = scmp.ne.s32.totalorder %s68, %s71
      %p77 = scmp.eq.s32.totalorder %s18, 0
      %p78 = por %p76, %p77
      %p79 = scmp.ne.s32.totalorder %s68, %s71
      %p80 = scmp.eq.s32.totalorder %s23, 3
      %p81 = por %p79, %p80
      %p82 = scmp.ne.s32.totalorder %s71, %s72
      %p83 = scmp.eq.s32.totalorder %s23, 0
      %p84 = por %p82, %p83
      %p85 = scmp.ne.s32.totalorder %s71, %s72
      %p86 = scmp.eq.s32.totalorder %s24, 3
      %p87 = por %p85, %p86
      %p89 = scmp.ne.s32.totalorder %s72, %s88
      %p90 = scmp.eq.s32.totalorder %s24, 0
      %p91 = por %p89, %p90
      %s92 = ssub.s32 %s25, %s37
      %s93 = ssub.s32 %s26, %s33
      %s94 = sor.u32 %s92, %s93
      %p95 = scmp.eq.s32.totalorder %s94, 0
      %s97 = sadd.s32 %s96, 1
      %s98 = scalar_select %p95, %s96, %s97
      %p101 = pneg %p95
      %p102 = scmp.eq.s32.totalorder %s18, 3
      %p103 = por %p101, %p102
      %p104 = scmp.ne.s32.totalorder %s96, %s99
      %p105 = scmp.eq.s32.totalorder %s18, 0
      %p106 = por %p104, %p105
      %p107 = scmp.ne.s32.totalorder %s96, %s99
      %p108 = scmp.eq.s32.totalorder %s23, 3
      %p109 = por %p107, %p108
      %p110 = scmp.ne.s32.totalorder %s99, %s100
      %p111 = scmp.eq.s32.totalorder %s23, 0
      %p112 = por %p110, %p111
      %p113 = scmp.ne.s32.totalorder %s99, %s100
      %p114 = scmp.eq.s32.totalorder %s24, 3
      %p115 = por %p113, %p114
      %p117 = scmp.ne.s32.totalorder %s100, %s116
      %p118 = scmp.eq.s32.totalorder %s24, 0
      %p119 = por %p117, %p118
      %s120 = ssub.s32 %s25, %s37
      %s121 = ssub.s32 %s26, %s33
      %s122 = sor.u32 %s120, %s121
      %p123 = scmp.eq.s32.totalorder %s122, 0
      %s125 = sadd.s32 %s124, 1
      %s126 = scalar_select %p123, %s124, %s125
      %p129 = pneg %p123
      %p130 = scmp.eq.s32.totalorder %s18, 3
      %p131 = por %p129, %p130
      %p132 = scmp.ne.s32.totalorder %s124, %s127
      %p133 = scmp.eq.s32.totalorder %s18, 0
      %p134 = por %p132, %p133
      %p135 = scmp.ne.s32.totalorder %s124, %s127
      %p136 = scmp.eq.s32.totalorder %s23, 3
      %p137 = por %p135, %p136
      %p138 = scmp.ne.s32.totalorder %s127, %s128
      %p139 = scmp.eq.s32.totalorder %s23, 0
      %p140 = por %p138, %p139
      %p141 = scmp.ne.s32.totalorder %s127, %s128
      %p142 = scmp.eq.s32.totalorder %s24, 3
      %p143 = por %p141, %p142
      %p145 = scmp.ne.s32.totalorder %s128, %s144
      %p146 = scmp.eq.s32.totalorder %s24, 0
      %p147 = por %p145, %p146
      %p148 = scmp.le.s32.totalorder 1, %s18
      %p149 = scmp.lt.s32.totalorder %s18, 5
      %p150 = pnand %p148, %p149
      %p151 = pneg %p150
      // Predicated region
      $region9: #{tpu_custom_call.1} parent=5 // pred_check
        _
      $region10: #{tpu_custom_call.1} parent=5 // pred_check_branch
        %153 = sbr.rel (%p150) target = $region12
      $region11: #{tpu_custom_call.1} parent=5 // pred_region
        %s154 = ssub.s32 %s18, 1
      $region12: #{tpu_custom_call.1} parent=5 // pred_fallthru
        _
      %p155 = scmp.lt.s32.totalorder %s18, 4
      // Predicated region
      $region13: #{tpu_custom_call.1} parent=5 // pred_check
        %p156 = pneg %p155
      $region14: #{tpu_custom_call.1} parent=5 // pred_check_branch
        %158 = sbr.rel (%p156) target = $region16
      $region15: #{tpu_custom_call.1} parent=5 // pred_region
        // Predicated region
        $region17: #{tpu_custom_call.1} parent=15 // pred_check
          %p159 = pneg %p50
        $region18: #{tpu_custom_call.1} parent=15 // pred_check_branch
          %161 = sbr.rel (%p159) target = $region20
        $region19: #{tpu_custom_call.1} parent=15 // pred_region
          %p162 = scmp.lt.s32.totalorder %s25, 3
          %s163 = scalar_select %p162, %s25, 3
          %s164 = scalar_lea.vmem %s0, %s163
        $region20: #{tpu_custom_call.1} parent=15 // pred_fallthru
          _
        // Predicated region
        $region21: #{tpu_custom_call.1} parent=15 // pred_check
          %p165 = pneg %p78
        $region22: #{tpu_custom_call.1} parent=15 // pred_check_branch
          %167 = sbr.rel (%p165) target = $region24
        $region23: #{tpu_custom_call.1} parent=15 // pred_region
          %s168 = sand.u32 %s68, 1
          %s169 = scalar_lea.sflag [#allocation3], %s168
          %s170 = sand.u32 %s68, 1
          %s171 = smul.addr %s170, 2
          %s172 = scalar_lea.vmem [#allocation2], %s171
          %174 = vsyncadd %s169, 0
          %s175 = sadd.s32 %s26, %s25
          %s176 = smul.addr %s175, 2
          %s177 = scalar_lea.hbm %s1, %s176
          %s179 = sshll.u32 %s177, 4
          %s180 = int_to_ptr.hbm [resolvable:$true] %s179
          %s181 = sshll.u32 %s172, 4
          %s182 = int_to_ptr.vmem [resolvable:$true] %s181
          %184 = dma.hbm_to_vmem [thread:$0]  %s180, 32, %s182, %s169
        $region24: #{tpu_custom_call.1} parent=15 // pred_fallthru
          _
        // Predicated region
        $region25: #{tpu_custom_call.1} parent=15 // pred_check
          %p185 = pneg %p106
        $region26: #{tpu_custom_call.1} parent=15 // pred_check_branch
          %187 = sbr.rel (%p185) target = $region28
        $region27: #{tpu_custom_call.1} parent=15 // pred_region
          %s188 = sand.u32 %s96, 1
          %s189 = scalar_lea.sflag [#allocation6], %s188
          %s190 = sand.u32 %s96, 1
          %s191 = smul.addr %s190, 2
          %s192 = scalar_lea.vmem [#allocation5], %s191
          %194 = vsyncadd %s189, 0
          %s195 = sadd.s32 %s26, %s25
          %s196 = smul.addr %s195, 2
          %s197 = scalar_lea.hbm %s2, %s196
          %s199 = sshll.u32 %s197, 4
          %s200 = int_to_ptr.hbm [resolvable:$true] %s199
          %s201 = sshll.u32 %s192, 4
          %s202 = int_to_ptr.vmem [resolvable:$true] %s201
          %204 = dma.hbm_to_vmem [thread:$0]  %s200, 32, %s202, %s189
        $region28: #{tpu_custom_call.1} parent=15 // pred_fallthru
          _
      $region16: #{tpu_custom_call.1} parent=5 // pred_fallthru
        _
      %p205 = scmp.le.s32.totalorder 1, %s18
      %p206 = scmp.lt.s32.totalorder %s18, 5
      %p207 = pnand %p205, %p206
      %p208 = pneg %p207
      // Predicated region
      $region29: #{tpu_custom_call.1} parent=5 // pred_check
        _
      $region30: #{tpu_custom_call.1} parent=5 // pred_check_branch
        %210 = sbr.rel (%p207) target = $region32
      $region31: #{tpu_custom_call.1} parent=5 // pred_region
        %s211 = ssub.s32 %s18, 1
        %s212 = sand.u32 %s71, 1
        %s213 = scalar_lea.sflag [#allocation3], %s212
        %s214 = sand.u32 %s71, 1
        %s215 = smul.addr %s214, 2
        %s216 = scalar_lea.vmem [#allocation2], %s215
        // Predicated region
        $region33: #{tpu_custom_call.1} parent=31 // pred_check
          %p217 = pneg %p84
        $region34: #{tpu_custom_call.1} parent=31 // pred_check_branch
          %219 = sbr.rel (%p217) target = $region36
        $region35: #{tpu_custom_call.1} parent=31 // pred_region
          %221 = dma.done %s213, 32
        $region36: #{tpu_custom_call.1} parent=31 // pred_fallthru
          _
        %s222 = sand.u32 %s99, 1
        %s223 = scalar_lea.sflag [#allocation6], %s222
        %s224 = sand.u32 %s99, 1
        %s225 = smul.addr %s224, 2
        %s226 = scalar_lea.vmem [#allocation5], %s225
        // Predicated region
        $region37: #{tpu_custom_call.1} parent=31 // pred_check
          %p227 = pneg %p112
        $region38: #{tpu_custom_call.1} parent=31 // pred_check_branch
          %229 = sbr.rel (%p227) target = $region40
        $region39: #{tpu_custom_call.1} parent=31 // pred_region
          %231 = dma.done %s223, 32
        $region40: #{tpu_custom_call.1} parent=31 // pred_fallthru
          _
        %p232 = scmp.lt.s32.totalorder %s27, 3
        %s233 = scalar_select %p232, %s27, 3
        %s234 = scalar_lea.vmem %s0, %s233
        %p235 = pneg %p56
        %p236 = pneg %p53
        %s237 = sand.u32 %s71, 1
        %s238 = scalar_lea.sflag [#allocation3], %s237
        %s239 = sand.u32 %s71, 1
        %s240 = smul.addr %s239, 2
        %s241 = scalar_lea.vmem [#allocation2], %s240
        %p242 = pneg %p84
        %p243 = pneg %p81
        %s244 = sand.u32 %s99, 1
        %s245 = scalar_lea.sflag [#allocation6], %s244
        %s246 = sand.u32 %s99, 1
        %s247 = smul.addr %s246, 2
        %s248 = scalar_lea.vmem [#allocation5], %s247
        %p249 = pneg %p112
        %p250 = pneg %p109
        %p251 = pneg %p140
        %p252 = pneg %p137
        %s253 = sand.u32 %s127, 1
        %s254 = scalar_lea.sflag [#allocation4], %s253
        %s255 = sand.u32 %s127, 1
        %s256 = smul.addr %s255, 2
        %s257 = scalar_lea.vmem [#allocation7], %s256
        %p258 = scmp.lt.s32.totalorder %s27, 3
        %s259 = scalar_select %p258, %s27, 3
        %s260 = scalar_lea.vmem %s0, %s259
        %v261 = vld [vmem:[%s260] sm:$0x1]
        %s262 = vtos %v261
        %p263 = scmp.ne.s32.totalorder %s262, 0
        %v264 = vld [vmem:[%s216] sm:$0x3]
        %v265 = vld [vmem:[%s226] sm:$0x3]
        %s266 = scalar_select %p263, 1, 0
        %v267 = vstv %s266
        %vm268 = vcmp.eq.s32.totalorder %v267, 1
        %v269 = vsel %vm268, %v264, %v265
        %vm270 = vcmask 123904
        %271 = vst.msk [vmem:[%s257] sm:$0x3] %vm270, %v269
        %s272 = sand.u32 %s127, 1
        %s273 = scalar_lea.sflag [#allocation4], %s272
        %s274 = sand.u32 %s127, 1
        %s275 = smul.addr %s274, 2
        %s276 = scalar_lea.vmem [#allocation7], %s275
        // Predicated region
        $region41: #{tpu_custom_call.1} parent=31 // pred_check
          %p277 = pneg %p137
        $region42: #{tpu_custom_call.1} parent=31 // pred_check_branch
          %279 = sbr.rel (%p277) target = $region44
        $region43: #{tpu_custom_call.1} parent=31 // pred_region
          %281 = vsyncadd %s273, 0
          %s282 = sadd.s32 %s28, %s27
          %s283 = smul.addr %s282, 2
          %s284 = scalar_lea.hbm %s3, %s283
          %s286 = sshll.u32 %s276, 4
          %s287 = int_to_ptr.vmem [resolvable:$true] %s286
          %s288 = sshll.u32 %s284, 4
          %s289 = int_to_ptr.hbm [resolvable:$true] %s288
          %291 = dma.vmem_to_hbm [thread:$0]  %s287, 32, %s289, %s273
        $region44: #{tpu_custom_call.1} parent=31 // pred_fallthru
          _
      $region32: #{tpu_custom_call.1} parent=5 // pred_fallthru
        _
      %p292 = scmp.le.s32.totalorder 2, %s18
      // Predicated region
      $region45: #{tpu_custom_call.1} parent=5 // pred_check
        %p293 = pneg %p292
      $region46: #{tpu_custom_call.1} parent=5 // pred_check_branch
        %295 = sbr.rel (%p293) target = $region48
      $region47: #{tpu_custom_call.1} parent=5 // pred_region
        %s296 = ssub.s32 %s18, 2
        // Predicated region
        $region49: #{tpu_custom_call.1} parent=47 // pred_check
          %p297 = pneg %p143
        $region50: #{tpu_custom_call.1} parent=47 // pred_check_branch
          %299 = sbr.rel (%p297) target = $region52
        $region51: #{tpu_custom_call.1} parent=47 // pred_region
          %s300 = sand.u32 %s128, 1
          %s301 = scalar_lea.sflag [#allocation4], %s300
          %s302 = sand.u32 %s128, 1
          %s303 = smul.addr %s302, 2
          %s304 = scalar_lea.vmem [#allocation7], %s303
          %306 = dma.done %s301, 32
        $region52: #{tpu_custom_call.1} parent=47 // pred_fallthru
          _
      $region48: #{tpu_custom_call.1} parent=5 // pred_fallthru
        _
    $region6: #{tpu_custom_call.1} parent=1 // loop_footer
      %s22 = sadd.s32 1, %s18
    $region7: #{tpu_custom_call.1} parent=1 // loop_footer_branch
      %17 = sbr.rel target = $region3
    $region8: #{tpu_custom_call.1} parent=1 // loop_exit
      _
    %307 = vsyncpa [#allocation3], 1
    %s308 = scalar_lea.sflag [#allocation3], 1
    %309 = vsyncpa %s308, 1
    %310 = vsyncpa [#allocation6], 1
    %s311 = scalar_lea.sflag [#allocation6], 1
    %312 = vsyncpa %s311, 1
    %313 = vsyncpa [#allocation4], 1
    %s314 = scalar_lea.sflag [#allocation4], 1
    %315 = vsyncpa %s314, 1

</llo_original>
